<compile_context>
chip_gen: v7x
topology: tpu7x:2x2x1
jax: 0.10.0
libtpu: 0.0.40
codegen_flags: <defaults>
</compile_context>

<pallas_src>
import jax
import jax.numpy as jnp
from jax.experimental import pallas as pl
from jax.experimental.pallas import tpu as pltpu


_LANE_CANDIDATES = (2048, 1024, 512, 256, 128)
_TARGET_TILE_BYTES = 4 << 20     # ~4 MiB per block; x4 for double-buffered in+out
_SMALL_TOTAL_BYTES = 1 << 20     # collapse grid for tiny tensors
_VMEM_LIMIT_BYTES = 32 << 20     # <= default scoped limit on v6e/v7x, raises v5e


def _choose_lane_layout(total):
    """Pick a lane-dense 2D view (rows, lanes) of the flattened input."""
    for lanes in _LANE_CANDIDATES:
        if total % lanes == 0:
            return total // lanes, lanes
    # Fallback: single full-width row (block == full array dims, always legal).
    return 1, total


def _choose_tile_rows(rows, bytes_per_row):
    """Largest sublane-aligned row tile within the per-block VMEM budget."""
    if rows * bytes_per_row <= _TARGET_TILE_BYTES:
        return rows
    tile = (_TARGET_TILE_BYTES // bytes_per_row) // 8 * 8
    # Either a multiple of 8 or equal to the full row extent -> (8,128)-legal.
    return int(min(max(8, tile), rows))


def _replicate_tile_kernel(x_ref, o_ref):
    # Output split dim is squeezed (None in block_shape): plain lane-dense copy.
    o_ref[...] = x_ref[...]


def _replicate_small_kernel(x_ref, o_ref):
    # Single grid step: write every split slot from one resident input tile.
    o_ref[...] = jnp.broadcast_to(x_ref[...][None], o_ref.shape)


def multi_task_forward(x, num_splits):
    """Pallas equivalent of MultiTask.forward: jnp.stack([x] * num_splits)."""
    orig_shape = x.shape
    total = int(x.size)
    itemsize = jnp.dtype(x.dtype).itemsize
    rows, lanes = _choose_lane_layout(total)
    x2d = x.reshape(rows, lanes)  # contiguous reshape: free, lane-dense view

    if num_splits * total * itemsize <= _SMALL_TOTAL_BYTES:
        # Tiny tensor: one grid step writes all splits (saves S-1 fixed
        # per-grid-step overheads of ~0.35 us each).
        out3d = pl.pallas_call(
            _replicate_small_kernel,
            out_shape=jax.ShapeDtypeStruct((num_splits, rows, lanes), x.dtype),
            grid=(1,),
            in_specs=[pl.BlockSpec((rows, lanes), lambda i: (0, 0))],
            out_specs=pl.BlockSpec((num_splits, rows, lanes),
                                   lambda i: (0, 0, 0)),
            compiler_params=pltpu.CompilerParams(
                dimension_semantics=("arbitrary",),
                vmem_limit_bytes=_VMEM_LIMIT_BYTES),
        )(x2d)
        return out3d.reshape((num_splits,) + orig_shape)

    tile_rows = _choose_tile_rows(rows, lanes * itemsize)
    num_row_tiles = pl.cdiv(rows, tile_rows)

    out3d = pl.pallas_call(
        _replicate_tile_kernel,
        out_shape=jax.ShapeDtypeStruct((num_splits, rows, lanes), x.dtype),
        # Split axis innermost: the input block index is constant along it,
        # so each input tile is fetched from HBM once and written S times.
        grid=(num_row_tiles, num_splits),
        in_specs=[pl.BlockSpec((tile_rows, lanes), lambda t, s: (t, 0))],
        out_specs=pl.BlockSpec((None, tile_rows, lanes),
                               lambda t, s: (s, t, 0)),
        compiler_params=pltpu.CompilerParams(
            dimension_semantics=("parallel", "arbitrary"),
            vmem_limit_bytes=_VMEM_LIMIT_BYTES),
    )(x2d)
    return out3d.reshape((num_splits,) + orig_shape)


class MultiTaskPallas:
    """Minimal JAX-side mirror of the torch MultiTask module (forward only)."""

    def __init__(self, num_splits=1, multi_task_factors=None):
        self.num_splits = num_splits
        # Parameters matching __init__; forward() does not use them.
        if multi_task_factors is None:
            self.loss_scales = jnp.ones((num_splits,), jnp.float32)
        else:
            self.loss_scales = jnp.asarray(multi_task_factors, jnp.float32)
        self.loss_offsets = jnp.zeros((num_splits,), jnp.float32)
        # TODO(synk): backward_hook / update_loss_scale / set_losses are
        # training-time optimizer bookkeeping on gradients, not part of the
        # forward pass; they are intentionally not ported to Pallas.

    def __call__(self, x):
        return multi_task_forward(x, self.num_splits)

    def get_loss_scales(self):
        return (self.loss_scales, self.loss_offsets)


if __name__ == "__main__":
    key = jax.random.PRNGKey(0)
    num_splits = 3
    module = MultiTaskPallas(num_splits=num_splits)

    # 1) Small NCHW input (matches the module's typical activation layout):
    #    exercises the collapsed single-step path.
    x_small = jax.random.normal(key, (2, 4, 16, 16), dtype=jnp.float32)
    out_small = jax.block_until_ready(module(x_small))
    ref_small = jnp.stack([x_small] * num_splits)
    assert out_small.shape == (num_splits, 2, 4, 16, 16), out_small.shape
    assert out_small.dtype == x_small.dtype
    assert bool(jnp.array_equal(out_small, ref_small))

    # 2) Moderately larger input: exercises the tiled lane-dense path
    #    (grid = (row_tiles, num_splits), split axis innermost).
    x_big = jax.random.normal(key, (2, 8, 128, 128), dtype=jnp.float32)
    out_big = jax.block_until_ready(module(x_big))
    ref_big = jnp.stack([x_big] * num_splits)
    assert out_big.shape == (num_splits, 2, 8, 128, 128), out_big.shape
    assert bool(jnp.array_equal(out_big, ref_big))

    print("KERNEL_OK")
</pallas_src>

<mosaic_0001>
module attributes {stable_mosaic.version = 11 : i64} {
  func.func @_replicate_small_kernel(%arg0: i32, %arg1: memref<1x2048xf32, #tpu.memory_space<vmem>>, %arg2: memref<3x1x2048xf32, #tpu.memory_space<vmem>>) attributes {dimension_semantics = [#tpu.dimension_semantics<arbitrary>], iteration_bounds = array<i64: 1>, scalar_prefetch = 0 : i64, scratch_operands = 0 : i64, tpu.core_type = #tpu.core_type<tc>, window_params = [{pipeline_mode = #tpu.pipeline_mode<synchronous>, transform_indices = @transform_0, window_bounds = array<i64: 1, 2048>}, {pipeline_mode = #tpu.pipeline_mode<synchronous>, transform_indices = @transform_1, window_bounds = array<i64: 3, 1, 2048>}]} {
    %c0 = arith.constant 0 : index
    %c0_0 = arith.constant 0 : index
    %0 = vector.load %arg1[%c0, %c0_0] : memref<1x2048xf32, #tpu.memory_space<vmem>>, vector<1x2048xf32>
    %1 = vector.shape_cast %0 : vector<1x2048xf32> to vector<1x1x2048xf32>
    %2 = vector.shape_cast %1 : vector<1x1x2048xf32> to vector<1x1x2048xf32>
    %3 = vector.broadcast %2 : vector<1x1x2048xf32> to vector<3x1x2048xf32>
    %c0_1 = arith.constant 0 : index
    %c0_2 = arith.constant 0 : index
    %c0_3 = arith.constant 0 : index
    %4 = vector.load %arg2[%c0_1, %c0_2, %c0_3] : memref<3x1x2048xf32, #tpu.memory_space<vmem>>, vector<3x1x2048xf32>
    tpu.vector_store %arg2[%c0_1, %c0_2, %c0_3], %3 {strides = array<i32>} : memref<3x1x2048xf32, #tpu.memory_space<vmem>>, vector<3x1x2048xf32>,
    return
  }
  func.func @transform_0(%arg0: i32) -> (i32, i32) {
    %c0_i32 = arith.constant 0 : i32
    %c0_i32_0 = arith.constant 0 : i32
    %c0_i32_1 = arith.constant 0 : i32
    return %c0_i32, %c0_i32_0 : i32, i32
  }
  func.func @transform_1(%arg0: i32) -> (i32, i32, i32) {
    %c0_i32 = arith.constant 0 : i32
    %c0_i32_0 = arith.constant 0 : i32
    %c0_i32_1 = arith.constant 0 : i32
    %c0_i32_2 = arith.constant 0 : i32
    return %c0_i32, %c0_i32_0, %c0_i32_1 : i32, i32, i32
  }
}

</mosaic_0001>

<llo_original>
// kernel: tpu_custom_call.1
$region0: #{tpu_custom_call.1}
  #allocation0 [shape = 'u32[]', space=smem, size = 0x4, offset = 0x4, fixed_abs, tag = 'smem constant byte address 0x4 - core index']
  #allocation1 [shape = 'u32[144,128]{1,0:T(1,128)}', space=vmem, size = 0x12000, scoped, tag = 'internal scratch']
  %s0 = inlined_call_operand.hbm [shape: f32[1,2048], index: 0, kind: input, shape index: {}]
  %s1 = inlined_call_operand.hbm [shape: f32[3,1,2048], index: 1, kind: output, shape index: {}]
  %s2 = sld [smem:[#allocation0]]
  $region18: #{tpu_custom_call.1} parent=0
    _
  %s4 = ssub.s32 1, %s2
  %s5 = scalar_select 0, %s4, %s2
  $region1: #{tpu_custom_call.1} parent=0
    #allocation2 [shape = 'u8[8192]{0}', space=vmem, size = 0x2000, scoped, tag = 'input window, operand 0, single buffered']
    #allocation3 [shape = 's32[1]{0}', space=sflag, size = 0x4, scoped, tag = 'scoped memory for tpu_custom_call.1']
    #allocation4 [shape = 's32[1]{0}', space=sflag, size = 0x4, scoped, tag = 'scoped memory for tpu_custom_call.1']
    #allocation5 [shape = 'u8[24576]{0}', space=vmem, size = 0x6000, scoped, tag = 'output window, operand 0, single buffered']
    %6 = vsyncpa [#allocation3], 0
    %7 = vsyncpa [#allocation4], 0
    // Predicated region
    $region2: #{tpu_custom_call.1} parent=1 // pred_check
      _
    $region3: #{tpu_custom_call.1} parent=1 // pred_check_branch
      %9 = sbr.rel (0) target = $region5
    $region4: #{tpu_custom_call.1} parent=1 // pred_region
      %s11 = ssub.s32 256, 256
      %12 = vsyncadd [#allocation3], %s11
      %s14 = sshll.u32 [#allocation2], 4
      %s15 = int_to_ptr.vmem [resolvable:$true] %s14
      %17 = dma.hbm_to_vmem [thread:$0]  %s0, 256, %s15, [#allocation3]
    $region5: #{tpu_custom_call.1} parent=1 // pred_fallthru
      _
    // Predicated region
    $region6: #{tpu_custom_call.1} parent=1 // pred_check
      _
    $region7: #{tpu_custom_call.1} parent=1 // pred_check_branch
      %19 = sbr.rel (0) target = $region9
    $region8: #{tpu_custom_call.1} parent=1 // pred_region
      %20 = dma.done [#allocation3], 256
    $region9: #{tpu_custom_call.1} parent=1 // pred_fallthru
      _
    %v21 = vld [vmem:[#allocation2] sm:$0xff]
    %v22 = vld [vmem:[#allocation2 + $0x8] sm:$0xff]
    %23 = vst [vmem:[#allocation5] sm:$0xff] %v21
    %24 = vst [vmem:[#allocation5 + $0x8] sm:$0xff] %v22
    %25 = vst [vmem:[#allocation5 + $0x10] sm:$0xff] %v21
    %26 = vst [vmem:[#allocation5 + $0x18] sm:$0xff] %v22
    %27 = vst [vmem:[#allocation5 + $0x20] sm:$0xff] %v21
    %28 = vst [vmem:[#allocation5 + $0x28] sm:$0xff] %v22
    // Predicated region
    $region10: #{tpu_custom_call.1} parent=1 // pred_check
      _
    $region11: #{tpu_custom_call.1} parent=1 // pred_check_branch
      %30 = sbr.rel (0) target = $region13
    $region12: #{tpu_custom_call.1} parent=1 // pred_region
      %s32 = ssub.s32 768, 768
      %33 = vsyncadd [#allocation4], %s32
      %s34 = sshll.u32 [#allocation5], 4
      %s35 = int_to_ptr.vmem [resolvable:$true] %s34
      %40 = dma.vmem_to_hbm [thread:$0]  %s35, 768, %s1, [#allocation4], 256, 256, 16
    $region13: #{tpu_custom_call.1} parent=1 // pred_fallthru
      _
    // Predicated region
    $region14: #{tpu_custom_call.1} parent=1 // pred_check
      _
    $region15: #{tpu_custom_call.1} parent=1 // pred_check_branch
      %42 = sbr.rel (0) target = $region17
    $region16: #{tpu_custom_call.1} parent=1 // pred_region
      %43 = dma.done [#allocation4], 768
    $region17: #{tpu_custom_call.1} parent=1 // pred_fallthru
      _
    %44 = vsyncpa [#allocation3], 1
    %45 = vsyncpa [#allocation4], 1

</llo_original>
